<compile_context>
chip_gen: v6e
topology: v6e:2x2x1
jax: 0.10.0
libtpu: 0.0.40
codegen_flags: <defaults>
</compile_context>

<pallas_src>
import functools

import jax
import jax.numpy as jnp
from jax.experimental import pallas as pl
from jax.experimental.pallas import tpu as pltpu


def _round_up(x, m):
    return (x + m - 1) // m * m


def _cdiv(a, b):
    return -(-a // b)


def _sublane_multiple(dtype):
    # f32 -> 8, bf16 -> 16, int8/fp8 -> 32 (packed dtypes tile VMEM deeper).
    return max(8, 32 // jnp.dtype(dtype).itemsize)


# ---------------------------------------------------------------------------
# Kernel 1: batched per-recording partial sums over (folded) time
#   stacked Y: (R, T_pad, Df)  ->  sums: (R, SPLIT, 1, Df) f32
# ---------------------------------------------------------------------------
def _sum_kernel(y_ref, sum_ref):
    t = pl.program_id(2)  # reduction axis position (top level only!)

    @pl.when(t == 0)
    def _init():
        sum_ref[...] = jnp.zeros_like(sum_ref)

    y = y_ref[...]
    if y.dtype == jnp.dtype(jnp.bfloat16):
        # MXU ones-vector reduce: native bf16 -> f32 accumulation, frees the
        # VPU (which has no bf16 path on v5e).  MXU is otherwise idle here.
        ones = jnp.ones((1, y.shape[0]), dtype=y.dtype)
        sum_ref[...] += jnp.dot(ones, y, preferred_element_type=jnp.float32)
    else:
        sum_ref[...] += jnp.sum(y.astype(jnp.float32), axis=0, keepdims=True)


@functools.partial(jax.jit, static_argnames=("tile_t", "split"))
def _batched_sum(y_stacked, *, tile_t, split):
    r, t_pad, d_fold = y_stacked.shape
    tiles_per_split = t_pad // (split * tile_t)
    return pl.pallas_call(
        _sum_kernel,
        out_shape=jax.ShapeDtypeStruct((r, split, 1, d_fold), jnp.float32),
        grid=(r, split, tiles_per_split),
        in_specs=[
            pl.BlockSpec(
                (None, tile_t, d_fold),
                lambda i, s, t: (i, s * tiles_per_split + t, 0),
            )
        ],
        out_specs=pl.BlockSpec(
            (None, None, 1, d_fold), lambda i, s, t: (i, s, 0, 0)
        ),
        compiler_params=pltpu.CompilerParams(
            dimension_semantics=("parallel", "parallel", "arbitrary")
        ),
    )(y_stacked)


# ---------------------------------------------------------------------------
# Kernel 2: lane-dense row broadcast of the selected mean
#   mean row (1, Df) -> (N_pad_fold, Df); wrapper un-folds to (N, D)
# ---------------------------------------------------------------------------
def _broadcast_kernel(mean_ref, o_ref):
    o_ref[...] = jnp.broadcast_to(mean_ref[...], o_ref.shape)


@functools.partial(jax.jit, static_argnames=("n_rows", "k", "d"))
def _repeat_rows(mean_fold_row, *, n_rows, k, d):
    d_fold = mean_fold_row.shape[-1]  # == k * d
    n_fold = _cdiv(n_rows, k)
    tile_n = min(4096, _round_up(n_fold, 8))
    grid_n = _cdiv(n_fold, tile_n)
    n_out = grid_n * tile_n
    out = pl.pallas_call(
        _broadcast_kernel,
        out_shape=jax.ShapeDtypeStruct((n_out, d_fold), mean_fold_row.dtype),
        grid=(grid_n,),
        in_specs=[pl.BlockSpec((1, d_fold), lambda n: (0, 0))],
        out_specs=pl.BlockSpec((tile_n, d_fold), lambda n: (n, 0)),
        compiler_params=pltpu.CompilerParams(dimension_semantics=("parallel",)),
    )(mean_fold_row)
    # Un-fold lanes back to (N, D) and trim padding rows.
    return out.reshape(n_out * k, d)[:n_rows]


# ---------------------------------------------------------------------------
# Module wrapper
# ---------------------------------------------------------------------------
class MeanPredictor:
    """Pallas/TPU port of the PyTorch MeanPredictor module."""

    _SPLIT = 2  # parallel time-split so both v7x TensorCores get work

    def __init__(self, Y_train):
        ys = [jnp.asarray(y) for y in Y_train]
        d = int(ys[0].shape[1])
        native = jnp.result_type(*[y.dtype for y in ys])
        sub = _sublane_multiple(native)

        # Lane-fold factor: pack k consecutive time rows into the 128 lanes.
        k = 128 // d if (d < 128 and 128 % d == 0) else 1
        d_fold = k * d

        folded, lengths = [], []
        for y in ys:
            t_i = int(y.shape[0])
            lengths.append(t_i)
            t_k = _round_up(max(t_i, 1), k)
            y_p = jnp.pad(y.astype(native), ((0, t_k - t_i), (0, 0)))
            folded.append(y_p.reshape(t_k // k, d_fold))
        t_fold_max = max(f.shape[0] for f in folded)

        # Tile the (folded) time axis: as big as useful, within a conservative
        # ~8 MiB double-buffered-input budget (safe for v5e 16 MiB / v6e 32 MiB
        # / v7x 32 MiB scoped-VMEM defaults), rounded to the sublane multiple.
        budget_rows = max(sub, (8 << 20) // (2 * d_fold * jnp.dtype(native).itemsize))
        tile_t = max(
            sub,
            min(2048, budget_rows, _round_up(_cdiv(t_fold_max, self._SPLIT), sub)),
        )
        tile_t = _round_up(tile_t, sub)
        tiles_per_split = _cdiv(t_fold_max, self._SPLIT * tile_t)
        t_fold_pad = self._SPLIT * tiles_per_split * tile_t

        stacked = jnp.stack(
            [jnp.pad(f, ((0, t_fold_pad - f.shape[0]), (0, 0))) for f in folded]
        )  # (R, T_fold_pad, Df) — zero tail is harmless for the sum

        sums = _batched_sum(stacked, tile_t=tile_t, split=self._SPLIT)
        # Epilogue (tiny, plain JAX): combine split partials, un-fold lanes,
        # scale by the TRUE 1/T_i, cast to native dtype (PyTorch parity).
        # Note: T_i == 0 yields NaN, same degenerate behavior as torch.mean.
        inv_len = jnp.asarray([1.0 / t if t > 0 else float("nan") for t in lengths],
                              jnp.float32)
        total = sums.sum(axis=1).reshape(len(ys), k, d).sum(axis=1)  # (R, D) f32
        means = (total * inv_len[:, None]).astype(native)            # (R, D)

        self._d, self._k = d, k
        self._means = means
        # Lane-dense broadcast source for forward(): mean tiled k times.
        self._means_fold = jnp.tile(means, (1, k))                    # (R, k*D)

    def forward(self, recording_index, recording_X):
        n = int(recording_X.shape[0])
        row = self._means_fold[int(recording_index)][None, :]         # (1, k*D)
        return _repeat_rows(row, n_rows=n, k=self._k, d=self._d)

    __call__ = forward


if __name__ == "__main__":
    key = jax.random.PRNGKey(0)
    k1, k2, k3 = jax.random.split(key, 3)

    D = 32           # feature dim
    T0, T1 = 16, 24  # time steps per training recording (ragged)
    N = 8            # rows in recording_X at forward time

    Y_train = [
        jax.random.normal(k1, (T0, D), dtype=jnp.float32),
        jax.random.normal(k2, (T1, D), dtype=jnp.float32),
    ]
    recording_X = jax.random.normal(k3, (N, D), dtype=jnp.float32)

    model = MeanPredictor(Y_train)

    out1 = jax.block_until_ready(model.forward(1, recording_X))
    out0 = jax.block_until_ready(model.forward(0, recording_X))

    ref1 = jnp.tile(jnp.mean(Y_train[1], axis=0, keepdims=True), (N, 1))
    ref0 = jnp.tile(jnp.mean(Y_train[0], axis=0, keepdims=True), (N, 1))

    assert out1.shape == (N, D), out1.shape
    assert out1.dtype == recording_X.dtype, out1.dtype
    assert jnp.allclose(out1, ref1, atol=1e-5), "mismatch vs reference (rec 1)"
    assert jnp.allclose(out0, ref0, atol=1e-5), "mismatch vs reference (rec 0)"

    print("KERNEL_OK")
</pallas_src>

<mosaic_0001>
module attributes {stable_mosaic.version = 11 : i64} {
  func.func @_sum_kernel(%arg0: i32, %arg1: i32, %arg2: i32, %arg3: memref<1x8x128xf32, #tpu.memory_space<vmem>>, %arg4: memref<1x1x1x128xf32, #tpu.memory_space<vmem>>) attributes {dimension_semantics = [#tpu.dimension_semantics<parallel>, #tpu.dimension_semantics<parallel>, #tpu.dimension_semantics<arbitrary>], iteration_bounds = array<i64: 2, 2, 1>, scalar_prefetch = 0 : i64, scratch_operands = 0 : i64, tpu.core_type = #tpu.core_type<tc>, window_params = [{transform_indices = @transform_0, window_bounds = array<i64: 1, 8, 128>}, {transform_indices = @transform_1, window_bounds = array<i64: 1, 1, 1, 128>}]} {
    %c0_i32 = arith.constant 0 : i32
    %0 = arith.cmpi eq, %arg2, %c0_i32 : i32
    %1 = arith.extui %0 : i1 to i32
    %c0_i32_0 = arith.constant 0 : i32
    %2 = arith.cmpi ne, %1, %c0_i32_0 : i32
    scf.if %2 {
      %cst_11 = arith.constant 0.000000e+00 : f32
      %13 = vector.broadcast %cst_11 : f32 to vector<1x128xf32>
      %c0_12 = arith.constant 0 : index
      %c0_13 = arith.constant 0 : index
      %c0_14 = arith.constant 0 : index
      %c0_15 = arith.constant 0 : index
      %14 = vector.load %arg4[%c0_12, %c0_13, %c0_14, %c0_15] : memref<1x1x1x128xf32, #tpu.memory_space<vmem>>, vector<1x1x1x128xf32>
      %15 = vector.shape_cast %14 : vector<1x1x1x128xf32> to vector<1x128xf32>
      %16 = vector.shape_cast %13 : vector<1x128xf32> to vector<1x1x1x128xf32>
      tpu.vector_store %arg4[%c0_12, %c0_13, %c0_14, %c0_15], %16 {strides = array<i32>} : memref<1x1x1x128xf32, #tpu.memory_space<vmem>>, vector<1x1x1x128xf32>,
    } else {
    }
    %c0 = arith.constant 0 : index
    %c0_1 = arith.constant 0 : index
    %c0_2 = arith.constant 0 : index
    %3 = vector.load %arg3[%c0, %c0_1, %c0_2] : memref<1x8x128xf32, #tpu.memory_space<vmem>>, vector<1x8x128xf32>
    %4 = vector.shape_cast %3 : vector<1x8x128xf32> to vector<8x128xf32>
    %c0_3 = arith.constant 0 : index
    %c0_4 = arith.constant 0 : index
    %c0_5 = arith.constant 0 : index
    %c0_6 = arith.constant 0 : index
    %5 = vector.load %arg4[%c0_3, %c0_4, %c0_5, %c0_6] : memref<1x1x1x128xf32, #tpu.memory_space<vmem>>, vector<1x1x1x128xf32>
    %6 = vector.shape_cast %5 : vector<1x1x1x128xf32> to vector<1x128xf32>
    %cst = arith.constant dense<0.000000e+00> : vector<128xf32>
    %7 = vector.multi_reduction <add>, %4, %cst [0] : vector<8x128xf32> to vector<128xf32>
    %8 = vector.shape_cast %7 : vector<128xf32> to vector<1x128xf32>
    %9 = arith.addf %6, %8 : vector<1x128xf32>
    %c0_7 = arith.constant 0 : index
    %c0_8 = arith.constant 0 : index
    %c0_9 = arith.constant 0 : index
    %c0_10 = arith.constant 0 : index
    %10 = vector.load %arg4[%c0_7, %c0_8, %c0_9, %c0_10] : memref<1x1x1x128xf32, #tpu.memory_space<vmem>>, vector<1x1x1x128xf32>
    %11 = vector.shape_cast %10 : vector<1x1x1x128xf32> to vector<1x128xf32>
    %12 = vector.shape_cast %9 : vector<1x128xf32> to vector<1x1x1x128xf32>
    tpu.vector_store %arg4[%c0_7, %c0_8, %c0_9, %c0_10], %12 {strides = array<i32>} : memref<1x1x1x128xf32, #tpu.memory_space<vmem>>, vector<1x1x1x128xf32>,
    return
  }
  func.func @transform_0(%arg0: i32, %arg1: i32, %arg2: i32) -> (i32, i32, i32) {
    %c1_i32 = arith.constant 1 : i32
    %0 = arith.muli %arg1, %c1_i32 : i32
    %1 = arith.addi %0, %arg2 : i32
    %c0_i32 = arith.constant 0 : i32
    %c0_i32_0 = arith.constant 0 : i32
    return %arg0, %1, %c0_i32 : i32, i32, i32
  }
  func.func @transform_1(%arg0: i32, %arg1: i32, %arg2: i32) -> (i32, i32, i32, i32) {
    %c0_i32 = arith.constant 0 : i32
    %c0_i32_0 = arith.constant 0 : i32
    %c0_i32_1 = arith.constant 0 : i32
    return %arg0, %arg1, %c0_i32, %c0_i32_0 : i32, i32, i32, i32
  }
}

</mosaic_0001>

<llo_original>
// kernel: _batched_sum.1
$region0: #{_batched_sum.1}
  #allocation0 [shape = 'u32[]', space=smem, size = 0x4, offset = 0x4, fixed_abs, tag = 'smem constant byte address 0x4 - core index']
  #allocation1 [shape = 'u32[144,128]{1,0:T(1,128)}', space=vmem, size = 0x12000, scoped, tag = 'internal scratch']
  %s0 = inlined_call_operand.hbm [shape: f32[2,16,128], index: 0, kind: input, shape index: {}]
  %s1 = inlined_call_operand.hbm [shape: f32[2,2,1,128], index: 1, kind: output, shape index: {}]
  %s2 = sld [smem:[#allocation0]]
  $region45: #{_batched_sum.1} parent=0
    _
  %s4 = ssub.s32 1, %s2
  %s5 = scalar_select 0, %s4, %s2
  $region1: #{_batched_sum.1} parent=0
    #allocation2 [shape = 'u8[8192]{0}', space=vmem, size = 0x2000, scoped, tag = 'input window, operand 0']
    #allocation3 [shape = 's32[2]{0}', space=sflag, size = 0x8, scoped, tag = 'scoped memory for _batched_sum.1']
    #allocation4 [shape = 's32[2]{0}', space=sflag, size = 0x8, scoped, tag = 'scoped memory for _batched_sum.1']
    #allocation5 [shape = 'u8[1024]{0}', space=vmem, size = 0x400, scoped, tag = 'output window, operand 0']
    %6 = vsyncpa [#allocation3], 0
    %s7 = scalar_lea.sflag [#allocation3], 1
    %8 = vsyncpa %s7, 0
    %9 = vsyncpa [#allocation4], 0
    %s10 = scalar_lea.sflag [#allocation4], 1
    %11 = vsyncpa %s10, 0
    loop: start=0, step=1, limit=6
    $region2: #{_batched_sum.1} parent=1 // loop_pre_header
      _
    $region3: #{_batched_sum.1} parent=1 // loop_header
      %s13 = sphi 0, %s17
      %p14 = scmp.ge.s32.totalorder %s13, 6
      %s20 = sphi 0, %s39
      %s21 = sphi 0, %s35
      %s22 = sphi 0, %s31
      %s23 = sphi 0, %s20
      %s24 = sphi 0, %s21
      %s25 = sphi 0, %s22
      %s26 = sphi 0, %s23
      %s27 = sphi 0, %s24
      %s28 = sphi 0, %s25
      %s46 = sphi 0, %s48
      %s49 = sphi 0, %s46
      %s50 = sphi 0, %s49
      %s66 = sphi 0, %s50
      %s74 = sphi 0, %s76
      %s77 = sphi 0, %s74
      %s78 = sphi 0, %s77
      %s94 = sphi 0, %s78
    $region4: #{_batched_sum.1} parent=1 // loop_header_branch
      %16 = sbr.rel (%p14) target = $region8
    $region5: #{_batched_sum.1} parent=1 // loop_body
      %s18 = ssub.s32 %s13, 1
      %s19 = ssub.s32 %s13, 2
      %s29 = sadd.s32 1, %s22
      %p30 = scmp.ge.s32.totalorder %s29, 1
      %s31 = scalar_select %p30, 0, %s29
      %s32 = sadd.s32 1, %s21
      %s33 = scalar_select %p30, %s32, %s21
      %p34 = scmp.ge.s32.totalorder %s33, 2
      %s35 = scalar_select %p34, 0, %s33
      %s36 = sadd.s32 1, %s20
      %s37 = scalar_select %p34, %s36, %s20
      %p38 = scmp.ge.s32.totalorder %s37, 2
      %s39 = scalar_select %p38, 0, %s37
      %s40 = sadd.s32 %s21, %s22
      %s41 = sadd.s32 %s35, %s31
      %s42 = ssub.s32 %s20, %s39
      %s43 = ssub.s32 %s40, %s41
      %s44 = sor.u32 %s42, %s43
      %p45 = scmp.eq.s32.totalorder %s44, 0
      %s47 = sadd.s32 %s46, 1
      %s48 = scalar_select %p45, %s46, %s47
      %p51 = pneg %p45
      %p52 = scmp.eq.s32.totalorder %s13, 3
      %p53 = por %p51, %p52
      %p54 = scmp.ne.s32.totalorder %s46, %s49
      %p55 = scmp.eq.s32.totalorder %s13, 0
      %p56 = por %p54, %p55
      %p57 = scmp.ne.s32.totalorder %s46, %s49
      %p58 = scmp.eq.s32.totalorder %s18, 3
      %p59 = por %p57, %p58
      %p60 = scmp.ne.s32.totalorder %s49, %s50
      %p61 = scmp.eq.s32.totalorder %s18, 0
      %p62 = por %p60, %p61
      %p63 = scmp.ne.s32.totalorder %s49, %s50
      %p64 = scmp.eq.s32.totalorder %s19, 3
      %p65 = por %p63, %p64
      %p67 = scmp.ne.s32.totalorder %s50, %s66
      %p68 = scmp.eq.s32.totalorder %s19, 0
      %p69 = por %p67, %p68
      %s70 = ssub.s32 %s20, %s39
      %s71 = ssub.s32 %s21, %s35
      %s72 = sor.u32 %s70, %s71
      %p73 = scmp.eq.s32.totalorder %s72, 0
      %s75 = sadd.s32 %s74, 1
      %s76 = scalar_select %p73, %s74, %s75
      %p79 = pneg %p73
      %p80 = scmp.eq.s32.totalorder %s13, 3
      %p81 = por %p79, %p80
      %p82 = scmp.ne.s32.totalorder %s74, %s77
      %p83 = scmp.eq.s32.totalorder %s13, 0
      %p84 = por %p82, %p83
      %p85 = scmp.ne.s32.totalorder %s74, %s77
      %p86 = scmp.eq.s32.totalorder %s18, 3
      %p87 = por %p85, %p86
      %p88 = scmp.ne.s32.totalorder %s77, %s78
      %p89 = scmp.eq.s32.totalorder %s18, 0
      %p90 = por %p88, %p89
      %p91 = scmp.ne.s32.totalorder %s77, %s78
      %p92 = scmp.eq.s32.totalorder %s19, 3
      %p93 = por %p91, %p92
      %p95 = scmp.ne.s32.totalorder %s78, %s94
      %p96 = scmp.eq.s32.totalorder %s19, 0
      %p97 = por %p95, %p96
      %p98 = scmp.le.s32.totalorder 1, %s13
      %p99 = scmp.lt.s32.totalorder %s13, 5
      %p100 = pnand %p98, %p99
      %p101 = pneg %p100
      // Predicated region
      $region9: #{_batched_sum.1} parent=5 // pred_check
        _
      $region10: #{_batched_sum.1} parent=5 // pred_check_branch
        %103 = sbr.rel (%p100) target = $region12
      $region11: #{_batched_sum.1} parent=5 // pred_region
        %s104 = ssub.s32 %s13, 1
      $region12: #{_batched_sum.1} parent=5 // pred_fallthru
        _
      %p105 = scmp.lt.s32.totalorder %s13, 4
      // Predicated region
      $region13: #{_batched_sum.1} parent=5 // pred_check
        %p106 = pneg %p105
      $region14: #{_batched_sum.1} parent=5 // pred_check_branch
        %108 = sbr.rel (%p106) target = $region16
      $region15: #{_batched_sum.1} parent=5 // pred_region
        // Predicated region
        $region17: #{_batched_sum.1} parent=15 // pred_check
          %p109 = pneg %p56
        $region18: #{_batched_sum.1} parent=15 // pred_check_branch
          %111 = sbr.rel (%p109) target = $region20
        $region19: #{_batched_sum.1} parent=15 // pred_region
          %s112 = sand.u32 %s46, 1
          %s113 = scalar_lea.sflag [#allocation3], %s112
          %s114 = sand.u32 %s46, 1
          %s115 = smul.addr %s114, 8
          %s116 = scalar_lea.vmem [#allocation2], %s115
          %s117 = sadd.s32 %s21, %s22
          %s119 = ssub.s32 128, 128
          %120 = vsyncadd %s113, %s119
          %s121 = smul.addr %s20, 2
          %s122 = sadd.s32 %s117, %s121
          %s123 = smul.addr %s122, 128
          %s124 = scalar_lea.hbm %s0, %s123
          %s126 = sshll.u32 %s116, 4
          %s127 = int_to_ptr.vmem [resolvable:$true] %s126
          %129 = dma.hbm_to_vmem [thread:$0]  %s124, 128, %s127, %s113
        $region20: #{_batched_sum.1} parent=15 // pred_fallthru
          _
      $region16: #{_batched_sum.1} parent=5 // pred_fallthru
        _
      %p130 = scmp.le.s32.totalorder 1, %s13
      %p131 = scmp.lt.s32.totalorder %s13, 5
      %p132 = pnand %p130, %p131
      %p133 = pneg %p132
      // Predicated region
      $region21: #{_batched_sum.1} parent=5 // pred_check
        _
      $region22: #{_batched_sum.1} parent=5 // pred_check_branch
        %135 = sbr.rel (%p132) target = $region24
      $region23: #{_batched_sum.1} parent=5 // pred_region
        %s136 = ssub.s32 %s13, 1
        %s137 = sand.u32 %s49, 1
        %s138 = scalar_lea.sflag [#allocation3], %s137
        %s139 = sand.u32 %s49, 1
        %s140 = smul.addr %s139, 8
        %s141 = scalar_lea.vmem [#allocation2], %s140
        // Predicated region
        $region25: #{_batched_sum.1} parent=23 // pred_check
          %p142 = pneg %p62
        $region26: #{_batched_sum.1} parent=23 // pred_check_branch
          %144 = sbr.rel (%p142) target = $region28
        $region27: #{_batched_sum.1} parent=23 // pred_region
          %145 = dma.done %s138, 128
        $region28: #{_batched_sum.1} parent=23 // pred_fallthru
          _
        %s146 = sand.u32 %s49, 1
        %s147 = scalar_lea.sflag [#allocation3], %s146
        %s148 = sand.u32 %s49, 1
        %s149 = smul.addr %s148, 8
        %s150 = scalar_lea.vmem [#allocation2], %s149
        %p151 = pneg %p62
        %p152 = pneg %p59
        %p153 = pneg %p90
        %p154 = pneg %p87
        %s155 = sand.u32 %s77, 1
        %s156 = scalar_lea.sflag [#allocation4], %s155
        %s157 = sand.u32 %s77, 1
        %s158 = scalar_lea.vmem [#allocation5], %s157
        %s159 = sadd.s32 %s24, %s25
        %p160 = scmp.eq.s32.totalorder %s25, 0
        // Predicated region
        $region29: #{_batched_sum.1} parent=23 // pred_check
          %p161 = pneg %p160
        $region30: #{_batched_sum.1} parent=23 // pred_check_branch
          %163 = sbr.rel (%p161) target = $region32
        $region31: #{_batched_sum.1} parent=23 // pred_region
          %164 = vst [vmem:[%s158] sm:$0x1] 0.0
        $region32: #{_batched_sum.1} parent=23 // pred_fallthru
          _
        %v165 = vld [vmem:[%s141] sm:$0xff]
        %v166 = vld [vmem:[%s158] sm:$0x1]
        %v167 = vrot.slane %v165, 4
        %v168 = vadd.f32 %v165, %v167
        %v169 = vrot.slane %v168, 2
        %v170 = vadd.f32 %v168, %v169
        %v171 = vrot.slane %v170, 1
        %v172 = vadd.f32 %v170, %v171
        %v173 = vadd.f32 %v166, %v172
        %174 = vst [vmem:[%s158] sm:$0x1] %v173
        %s175 = sand.u32 %s77, 1
        %s176 = scalar_lea.sflag [#allocation4], %s175
        %s177 = sand.u32 %s77, 1
        %s178 = scalar_lea.vmem [#allocation5], %s177
        // Predicated region
        $region33: #{_batched_sum.1} parent=23 // pred_check
          %p179 = pneg %p87
        $region34: #{_batched_sum.1} parent=23 // pred_check_branch
          %181 = sbr.rel (%p179) target = $region36
        $region35: #{_batched_sum.1} parent=23 // pred_region
          %s183 = ssub.s32 16, 16
          %184 = vsyncadd %s176, %s183
          %s185 = smul.addr %s23, 2
          %s186 = sadd.s32 %s24, %s185
          %s187 = smul.addr %s186, 16
          %s188 = scalar_lea.hbm %s1, %s187
          %s190 = sshll.u32 %s178, 4
          %s191 = int_to_ptr.vmem [resolvable:$true] %s190
          %193 = dma.vmem_to_hbm [thread:$0]  %s191, 16, %s188, %s176
        $region36: #{_batched_sum.1} parent=23 // pred_fallthru
          _
      $region24: #{_batched_sum.1} parent=5 // pred_fallthru
        _
      %p194 = scmp.le.s32.totalorder 2, %s13
      // Predicated region
      $region37: #{_batched_sum.1} parent=5 // pred_check
        %p195 = pneg %p194
      $region38: #{_batched_sum.1} parent=5 // pred_check_branch
        %197 = sbr.rel (%p195) target = $region40
      $region39: #{_batched_sum.1} parent=5 // pred_region
        %s198 = ssub.s32 %s13, 2
        // Predicated region
        $region41: #{_batched_sum.1} parent=39 // pred_check
          %p199 = pneg %p93
        $region42: #{_batched_sum.1} parent=39 // pred_check_branch
          %201 = sbr.rel (%p199) target = $region44
        $region43: #{_batched_sum.1} parent=39 // pred_region
          %s202 = sand.u32 %s78, 1
          %s203 = scalar_lea.sflag [#allocation4], %s202
          %s204 = sand.u32 %s78, 1
          %s205 = scalar_lea.vmem [#allocation5], %s204
          %206 = dma.done %s203, 16
        $region44: #{_batched_sum.1} parent=39 // pred_fallthru
          _
      $region40: #{_batched_sum.1} parent=5 // pred_fallthru
        _
    $region6: #{_batched_sum.1} parent=1 // loop_footer
      %s17 = sadd.s32 1, %s13
    $region7: #{_batched_sum.1} parent=1 // loop_footer_branch
      %12 = sbr.rel target = $region3
    $region8: #{_batched_sum.1} parent=1 // loop_exit
      _
    %207 = vsyncpa [#allocation3], 1
    %s208 = scalar_lea.sflag [#allocation3], 1
    %209 = vsyncpa %s208, 1
    %210 = vsyncpa [#allocation4], 1
    %s211 = scalar_lea.sflag [#allocation4], 1
    %212 = vsyncpa %s211, 1

</llo_original>
